<compile_context>
chip_gen: v6e
topology: v6e:2x2x1
jax: 0.10.0
libtpu: 0.0.40
codegen_flags: <defaults>
</compile_context>

<pallas_src>
import jax
import jax.numpy as jnp
from jax import lax
from jax.experimental import pallas as pl
from jax.experimental.pallas import tpu as pltpu


_NEG_LARGE = float(jnp.finfo(jnp.float32).min)   # finite "-inf" for masking
_MAX_BATCH_ROWS = 64                             # cap on rows per batch tile


def _make_kernel(has_mask, tail, seq_len):
    """Builds the kernel; `has_mask` / `tail` are static specialization flags."""

    def kernel(*refs):
        if has_mask:
            x_ref, ctx_ref, mask_ref, o_ref, m_sc, l_sc, acc_sc = refs
        else:
            x_ref, ctx_ref, o_ref, m_sc, l_sc, acc_sc = refs
            mask_ref = None

        si = pl.program_id(1)
        ns = pl.num_programs(1)
        tb, ts, h = x_ref.shape

        @pl.when(si == 0)
        def _init():
            m_sc[...] = jnp.full((tb, 1, 1), _NEG_LARGE, jnp.float32)
            l_sc[...] = jnp.zeros((tb, 1, 1), jnp.float32)
            acc_sc[...] = jnp.zeros((tb, 1, h), jnp.float32)

        x = x_ref[...]                                         # native dtype
        if tail:
            # Ragged last block: zero out-of-range rows so boundary-block
            # garbage can never reach the accumulator.
            pos_rows = si * ts + lax.broadcasted_iota(jnp.int32, (tb, ts, 1), 1)
            x = jnp.where(pos_rows < seq_len, x, jnp.zeros_like(x))

        ctx = jnp.broadcast_to(ctx_ref[...], (tb, 1, h)).astype(x.dtype)

        # scores[b, 1, s] = sum_h ctx[h] * x[b, s, h]   (MXU, f32 accumulation)
        s = lax.dot_general(
            ctx, x,
            dimension_numbers=(((2,), (2,)), ((0,), (0,))),
            preferred_element_type=jnp.float32)                # [tb, 1, ts]

        valid = None
        if has_mask:
            valid = mask_ref[...] != 0                         # [tb, 1, ts]
        if tail:
            pos = si * ts + lax.broadcasted_iota(jnp.int32, (tb, 1, ts), 2)
            in_range = pos < seq_len
            valid = in_range if valid is None else jnp.logical_and(valid, in_range)
        if valid is not None:
            # Finite large negative: exp underflows to exactly 0, no NaNs.
            s = jnp.where(valid, s, _NEG_LARGE)

        # Online softmax update across sequence tiles.
        m_prev = m_sc[...]
        m_new = jnp.maximum(m_prev, jnp.max(s, axis=-1, keepdims=True))
        alpha = jnp.exp(m_prev - m_new)
        p = jnp.exp(s - m_new)                                 # [tb, 1, ts] f32

        l_sc[...] = alpha * l_sc[...] + jnp.sum(p, axis=-1, keepdims=True)
        acc_sc[...] = alpha * acc_sc[...] + lax.dot_general(
            p.astype(x.dtype), x,                              # P @ X on the MXU
            dimension_numbers=(((2,), (1,)), ((0,), (0,))),
            preferred_element_type=jnp.float32)                # [tb, 1, h]
        m_sc[...] = m_new

        @pl.when(si == ns - 1)
        def _finalize():
            inv_l = pl.reciprocal(l_sc[...], approx=False)
            o_ref[...] = (acc_sc[...] * inv_l).astype(o_ref.dtype)

    return kernel


def _largest_divisor_leq(n, cap):
    for d in range(min(n, cap), 0, -1):
        if n % d == 0:
            return d
    return 1


def _vmem_budgets():
    """Generation-aware (per-buffer x-tile budget, vmem_limit_bytes)."""
    try:
        cap = int(pltpu.get_tpu_info().vmem_capacity_bytes)
    except Exception:
        cap = 64 * 1024 * 1024                    # conservative (v7x-sized)
    if cap >= 96 * 1024 * 1024:                   # v5e / v6e: 128 MiB per core
        return 14 * 1024 * 1024, 96 * 1024 * 1024
    # v7x (64 MiB per core) or unknown: smaller tiles, leave pipeline headroom.
    limit = min(48 * 1024 * 1024, max(cap * 3 // 4, 16 * 1024 * 1024))
    return 6 * 1024 * 1024, limit


def _select_tiles(B, S, H, itemsize, budget, seq_tile=None):
    """Pick (TB, TS).  TS is S, a 128-multiple divisor of S, or (rarely) a
    ragged 128-multiple handled by in-kernel tail masking.  x is never padded."""
    row_bytes = H * itemsize

    def fits(tb_, ts_):
        return tb_ * ts_ * row_bytes <= budget

    tb = _largest_divisor_leq(B, _MAX_BATCH_ROWS)

    if seq_tile is not None:
        seq_tile = int(seq_tile)
        if seq_tile >= S:
            ts = S
        elif seq_tile % 128 == 0:
            ts = seq_tile
        else:
            raise ValueError("seq_tile must be a multiple of 128 or >= S")
    else:
        cands = sorted({S, *(d for d in range(128, S + 1, 128) if S % d == 0)},
                       reverse=True)
        ts = next((c for c in cands if fits(tb, c)), None)
        if ts is None:
            # Nothing fits at this batch tile (large H): shrink the batch tile
            # first (v7x fall-through fix), then fall back to a ragged
            # 128-multiple seq tile whose tail is masked inside the kernel.
            min_ts = min(S, 128)
            while tb > 1 and not fits(tb, min_ts):
                tb = _largest_divisor_leq(B, max(1, tb // 2))
            ts = next((c for c in cands if fits(tb, c)), None)
            if ts is None:
                if S > 128:
                    ts = max(128, (budget // (tb * row_bytes)) // 128 * 128)
                    ts = min(ts, (S // 128) * 128)
                else:
                    ts = S

    # Keep >= 2 blocks on the parallel batch axis so both v7x TensorCores get
    # work; on single-core chips this only adds one cheap grid step.
    if B >= 2 and B // tb < 2:
        tb = _largest_divisor_leq(B, B // 2)
    return tb, ts


def agg_attention(x, context, mask=None, *, seq_tile=None):
    """x: [B, S, H]; context: [H]; mask: optional bool [B, S] (False = pad).

    Note: rows whose mask is entirely False yield a finite uniform average of
    the row (PyTorch's masked_fill(-inf) + softmax yields NaN there).
    """
    B, S, H = x.shape
    dtype = x.dtype
    itemsize = jnp.dtype(dtype).itemsize

    x_budget, vmem_limit = _vmem_budgets()
    tb, ts = _select_tiles(B, S, H, itemsize, x_budget, seq_tile)
    ns = pl.cdiv(S, ts)
    tail = (S % ts) != 0
    has_mask = mask is not None

    ctx = context.reshape(1, 1, H).astype(dtype)

    in_specs = [
        pl.BlockSpec((tb, ts, H), lambda bi, si: (bi, si, 0)),     # x
        pl.BlockSpec((1, 1, H), lambda bi, si: (0, 0, 0)),         # context
    ]
    args = [x, ctx]
    if has_mask:
        mask_i = mask.astype(jnp.int32).reshape(B, 1, S)
        in_specs.append(pl.BlockSpec((tb, 1, ts), lambda bi, si: (bi, 0, si)))
        args.append(mask_i)

    out3 = pl.pallas_call(
        _make_kernel(has_mask, tail, S),
        out_shape=jax.ShapeDtypeStruct((B, 1, H), dtype),
        grid_spec=pltpu.PrefetchScalarGridSpec(
            num_scalar_prefetch=0,
            grid=(B // tb, ns),
            in_specs=in_specs,
            out_specs=pl.BlockSpec((tb, 1, H), lambda bi, si: (bi, 0, 0)),
            scratch_shapes=[
                pltpu.VMEM((tb, 1, 1), jnp.float32),   # running max
                pltpu.VMEM((tb, 1, 1), jnp.float32),   # running denom
                pltpu.VMEM((tb, 1, H), jnp.float32),   # running weighted sum
            ],
        ),
        compiler_params=pltpu.CompilerParams(
            dimension_semantics=("parallel", "arbitrary"),
            vmem_limit_bytes=vmem_limit,
        ),
    )(*args)
    return out3.reshape(B, H)


def agg_attention_ref(x, context, mask=None):
    """Pure-JAX reference matching the PyTorch module."""
    scores = jnp.einsum('bij,j->bi', x, context, precision=lax.Precision.HIGHEST)
    if mask is not None:
        scores = jnp.where(mask, scores, -jnp.inf)
    scores = jax.nn.softmax(scores, axis=1)
    return jnp.einsum('bij,bi->bj', x, scores, precision=lax.Precision.HIGHEST)


if __name__ == "__main__":
    B, S, H = 2, 8, 32

    key = jax.random.PRNGKey(0)
    x = jax.random.normal(key, (B, S, H), dtype=jnp.float32)

    # Parameter init as in the module: constant 1/hidden_size.
    context = jnp.full((H,), 1.0 / H, dtype=jnp.float32)

    # Deterministic mask: pad the tail of the second sequence.
    mask = jnp.array(
        [[True] * S,
         [True] * (S - 3) + [False] * 3],
        dtype=bool,
    )

    out = jax.block_until_ready(agg_attention(x, context, mask))
    ref = agg_attention_ref(x, context, mask)
    assert out.shape == (B, H)
    assert jnp.allclose(out, ref, atol=5e-3, rtol=5e-3)

    # No-mask specialized kernel (no mask HBM stream at all).
    out_nm = jax.block_until_ready(agg_attention(x, context, None))
    ref_nm = agg_attention_ref(x, context, None)
    assert jnp.allclose(out_nm, ref_nm, atol=5e-3, rtol=5e-3)

    # Multi-tile online softmax (seq grid = 2 blocks, batch grid = 2 blocks):
    # row 0 has tail padding, row 1's FIRST seq block is fully masked, which
    # exercises the finite-negative alpha-wipe of the bogus accumulation.
    B2, S2 = 2, 256
    x2 = jax.random.normal(jax.random.PRNGKey(0), (B2, S2, H), dtype=jnp.float32)
    pos = jnp.arange(S2)
    mask2 = jnp.stack([pos < 200, pos >= 160])
    out2 = jax.block_until_ready(agg_attention(x2, context, mask2, seq_tile=128))
    ref2 = agg_attention_ref(x2, context, mask2)
    assert jnp.allclose(out2, ref2, atol=5e-3, rtol=5e-3)

    print("KERNEL_OK")
</pallas_src>

<mosaic_0001>
module attributes {stable_mosaic.version = 11 : i64} {
  func.func @kernel(%arg0: i32, %arg1: i32, %arg2: memref<1x8x32xf32, #tpu.memory_space<vmem>>, %arg3: memref<1x1x32xf32, #tpu.memory_space<vmem>>, %arg4: memref<1x1x8xi32, #tpu.memory_space<vmem>>, %arg5: memref<1x1x32xf32, #tpu.memory_space<vmem>>, %arg6: memref<1x1x1xf32, #tpu.memory_space<vmem>>, %arg7: memref<1x1x1xf32, #tpu.memory_space<vmem>>, %arg8: memref<1x1x32xf32, #tpu.memory_space<vmem>>) attributes {dimension_semantics = [#tpu.dimension_semantics<parallel>, #tpu.dimension_semantics<arbitrary>], iteration_bounds = array<i64: 2, 1>, scalar_prefetch = 0 : i64, scratch_operands = 3 : i64, tpu.core_type = #tpu.core_type<tc>, window_params = [{transform_indices = @transform_0, window_bounds = array<i64: 1, 8, 32>}, {pipeline_mode = #tpu.pipeline_mode<synchronous>, transform_indices = @transform_1, window_bounds = array<i64: 1, 1, 32>}, {transform_indices = @transform_2, window_bounds = array<i64: 1, 1, 8>}, {transform_indices = @transform_3, window_bounds = array<i64: 1, 1, 32>}]} {
    %c0_i32 = arith.constant 0 : i32
    %0 = arith.cmpi eq, %arg1, %c0_i32 : i32
    %1 = arith.extui %0 : i1 to i32
    %c0_i32_0 = arith.constant 0 : i32
    %2 = arith.cmpi ne, %1, %c0_i32_0 : i32
    scf.if %2 {
      %cst_34 = arith.constant -3.40282347E+38 : f32
      %36 = vector.broadcast %cst_34 : f32 to vector<1x1x1xf32>
      %c0_35 = arith.constant 0 : index
      %c0_36 = arith.constant 0 : index
      %c0_37 = arith.constant 0 : index
      %37 = vector.load %arg6[%c0_35, %c0_36, %c0_37] : memref<1x1x1xf32, #tpu.memory_space<vmem>>, vector<1x1x1xf32>
      tpu.vector_store %arg6[%c0_35, %c0_36, %c0_37], %36 {strides = array<i32>} : memref<1x1x1xf32, #tpu.memory_space<vmem>>, vector<1x1x1xf32>,
      %cst_38 = arith.constant 0.000000e+00 : f32
      %38 = vector.broadcast %cst_38 : f32 to vector<1x1x1xf32>
      %c0_39 = arith.constant 0 : index
      %c0_40 = arith.constant 0 : index
      %c0_41 = arith.constant 0 : index
      %39 = vector.load %arg7[%c0_39, %c0_40, %c0_41] : memref<1x1x1xf32, #tpu.memory_space<vmem>>, vector<1x1x1xf32>
      tpu.vector_store %arg7[%c0_39, %c0_40, %c0_41], %38 {strides = array<i32>} : memref<1x1x1xf32, #tpu.memory_space<vmem>>, vector<1x1x1xf32>,
      %cst_42 = arith.constant 0.000000e+00 : f32
      %40 = vector.broadcast %cst_42 : f32 to vector<1x1x32xf32>
      %c0_43 = arith.constant 0 : index
      %c0_44 = arith.constant 0 : index
      %c0_45 = arith.constant 0 : index
      %41 = vector.load %arg8[%c0_43, %c0_44, %c0_45] : memref<1x1x32xf32, #tpu.memory_space<vmem>>, vector<1x1x32xf32>
      tpu.vector_store %arg8[%c0_43, %c0_44, %c0_45], %40 {strides = array<i32>} : memref<1x1x32xf32, #tpu.memory_space<vmem>>, vector<1x1x32xf32>,
    } else {
    }
    %c0 = arith.constant 0 : index
    %c0_1 = arith.constant 0 : index
    %c0_2 = arith.constant 0 : index
    %3 = vector.load %arg2[%c0, %c0_1, %c0_2] : memref<1x8x32xf32, #tpu.memory_space<vmem>>, vector<1x8x32xf32>
    %c0_3 = arith.constant 0 : index
    %c0_4 = arith.constant 0 : index
    %c0_5 = arith.constant 0 : index
    %4 = vector.load %arg3[%c0_3, %c0_4, %c0_5] : memref<1x1x32xf32, #tpu.memory_space<vmem>>, vector<1x1x32xf32>
    %cst = arith.constant dense<0.000000e+00> : vector<1x1x8xf32>
    %5 = tpu.matmul %4, %3, %cst {dimension_numbers = #tpu.dot_dimension_numbers<[2], [2], [1], [1], [0, 0, 0, 1, 1, 1], [0], [0]>} : vector<1x1x32xf32>, vector<1x8x32xf32>, vector<1x1x8xf32> -> vector<1x1x8xf32>
    %c0_6 = arith.constant 0 : index
    %c0_7 = arith.constant 0 : index
    %c0_8 = arith.constant 0 : index
    %6 = vector.load %arg4[%c0_6, %c0_7, %c0_8] : memref<1x1x8xi32, #tpu.memory_space<vmem>>, vector<1x1x8xi32>
    %c0_i32_9 = arith.constant 0 : i32
    %7 = vector.broadcast %c0_i32_9 : i32 to vector<1x1x8xi32>
    %8 = arith.cmpi ne, %6, %7 : vector<1x1x8xi32>
    %cst_10 = arith.constant -3.40282347E+38 : f32
    %9 = vector.broadcast %cst_10 : f32 to vector<1x1x8xf32>
    %10 = arith.select %8, %5, %9 : vector<1x1x8xi1>, vector<1x1x8xf32>
    %c0_11 = arith.constant 0 : index
    %c0_12 = arith.constant 0 : index
    %c0_13 = arith.constant 0 : index
    %11 = vector.load %arg6[%c0_11, %c0_12, %c0_13] : memref<1x1x1xf32, #tpu.memory_space<vmem>>, vector<1x1x1xf32>
    %cst_14 = arith.constant dense<0xFF800000> : vector<1x1xf32>
    %12 = vector.multi_reduction <maximumf>, %10, %cst_14 [2] : vector<1x1x8xf32> to vector<1x1xf32>
    %13 = vector.shape_cast %12 : vector<1x1xf32> to vector<1x1x1xf32>
    %14 = arith.maximumf %11, %13 : vector<1x1x1xf32>
    %15 = arith.subf %11, %14 : vector<1x1x1xf32>
    %16 = math.exp %15 : vector<1x1x1xf32>
    %17 = vector.broadcast %14 : vector<1x1x1xf32> to vector<1x1x8xf32>
    %18 = arith.subf %10, %17 : vector<1x1x8xf32>
    %19 = math.exp %18 : vector<1x1x8xf32>
    %c0_15 = arith.constant 0 : index
    %c0_16 = arith.constant 0 : index
    %c0_17 = arith.constant 0 : index
    %20 = vector.load %arg7[%c0_15, %c0_16, %c0_17] : memref<1x1x1xf32, #tpu.memory_space<vmem>>, vector<1x1x1xf32>
    %21 = arith.mulf %16, %20 : vector<1x1x1xf32>
    %cst_18 = arith.constant dense<0.000000e+00> : vector<1x1xf32>
    %22 = vector.multi_reduction <add>, %19, %cst_18 [2] : vector<1x1x8xf32> to vector<1x1xf32>
    %23 = vector.shape_cast %22 : vector<1x1xf32> to vector<1x1x1xf32>
    %24 = arith.addf %21, %23 : vector<1x1x1xf32>
    %c0_19 = arith.constant 0 : index
    %c0_20 = arith.constant 0 : index
    %c0_21 = arith.constant 0 : index
    %25 = vector.load %arg7[%c0_19, %c0_20, %c0_21] : memref<1x1x1xf32, #tpu.memory_space<vmem>>, vector<1x1x1xf32>
    tpu.vector_store %arg7[%c0_19, %c0_20, %c0_21], %24 {strides = array<i32>} : memref<1x1x1xf32, #tpu.memory_space<vmem>>, vector<1x1x1xf32>,
    %c0_22 = arith.constant 0 : index
    %c0_23 = arith.constant 0 : index
    %c0_24 = arith.constant 0 : index
    %26 = vector.load %arg8[%c0_22, %c0_23, %c0_24] : memref<1x1x32xf32, #tpu.memory_space<vmem>>, vector<1x1x32xf32>
    %27 = vector.broadcast %16 : vector<1x1x1xf32> to vector<1x1x32xf32>
    %28 = arith.mulf %27, %26 : vector<1x1x32xf32>
    %cst_25 = arith.constant dense<0.000000e+00> : vector<1x1x32xf32>
    %29 = tpu.matmul %19, %3, %cst_25 {dimension_numbers = #tpu.dot_dimension_numbers<[2], [1], [1], [2], [0, 0, 0, 1, 1, 2], [0], [0]>} : vector<1x1x8xf32>, vector<1x8x32xf32>, vector<1x1x32xf32> -> vector<1x1x32xf32>
    %30 = arith.addf %28, %29 : vector<1x1x32xf32>
    %c0_26 = arith.constant 0 : index
    %c0_27 = arith.constant 0 : index
    %c0_28 = arith.constant 0 : index
    %31 = vector.load %arg8[%c0_26, %c0_27, %c0_28] : memref<1x1x32xf32, #tpu.memory_space<vmem>>, vector<1x1x32xf32>
    tpu.vector_store %arg8[%c0_26, %c0_27, %c0_28], %30 {strides = array<i32>} : memref<1x1x32xf32, #tpu.memory_space<vmem>>, vector<1x1x32xf32>,
    %c0_29 = arith.constant 0 : index
    %c0_30 = arith.constant 0 : index
    %c0_31 = arith.constant 0 : index
    %32 = vector.load %arg6[%c0_29, %c0_30, %c0_31] : memref<1x1x1xf32, #tpu.memory_space<vmem>>, vector<1x1x1xf32>
    tpu.vector_store %arg6[%c0_29, %c0_30, %c0_31], %14 {strides = array<i32>} : memref<1x1x1xf32, #tpu.memory_space<vmem>>, vector<1x1x1xf32>,
    %c0_i32_32 = arith.constant 0 : i32
    %33 = arith.cmpi eq, %arg1, %c0_i32_32 : i32
    %34 = arith.extui %33 : i1 to i32
    %c0_i32_33 = arith.constant 0 : i32
    %35 = arith.cmpi ne, %34, %c0_i32_33 : i32
    scf.if %35 {
      %c0_34 = arith.constant 0 : index
      %c0_35 = arith.constant 0 : index
      %c0_36 = arith.constant 0 : index
      %36 = vector.load %arg7[%c0_34, %c0_35, %c0_36] : memref<1x1x1xf32, #tpu.memory_space<vmem>>, vector<1x1x1xf32>
      %37 = tpu.reciprocal %36 : vector<1x1x1xf32> -> vector<1x1x1xf32>
      %c0_37 = arith.constant 0 : index
      %c0_38 = arith.constant 0 : index
      %c0_39 = arith.constant 0 : index
      %38 = vector.load %arg8[%c0_37, %c0_38, %c0_39] : memref<1x1x32xf32, #tpu.memory_space<vmem>>, vector<1x1x32xf32>
      %39 = vector.broadcast %37 : vector<1x1x1xf32> to vector<1x1x32xf32>
      %40 = arith.mulf %38, %39 : vector<1x1x32xf32>
      %c0_40 = arith.constant 0 : index
      %c0_41 = arith.constant 0 : index
      %c0_42 = arith.constant 0 : index
      %41 = vector.load %arg5[%c0_40, %c0_41, %c0_42] : memref<1x1x32xf32, #tpu.memory_space<vmem>>, vector<1x1x32xf32>
      tpu.vector_store %arg5[%c0_40, %c0_41, %c0_42], %40 {strides = array<i32>} : memref<1x1x32xf32, #tpu.memory_space<vmem>>, vector<1x1x32xf32>,
    } else {
    }
    return
  }
  func.func @transform_0(%arg0: i32, %arg1: i32) -> (i32, i32, i32) {
    %c0_i32 = arith.constant 0 : i32
    %c0_i32_0 = arith.constant 0 : i32
    return %arg0, %arg1, %c0_i32 : i32, i32, i32
  }
  func.func @transform_1(%arg0: i32, %arg1: i32) -> (i32, i32, i32) {
    %c0_i32 = arith.constant 0 : i32
    %c0_i32_0 = arith.constant 0 : i32
    %c0_i32_1 = arith.constant 0 : i32
    %c0_i32_2 = arith.constant 0 : i32
    return %c0_i32, %c0_i32_0, %c0_i32_1 : i32, i32, i32
  }
  func.func @transform_2(%arg0: i32, %arg1: i32) -> (i32, i32, i32) {
    %c0_i32 = arith.constant 0 : i32
    %c0_i32_0 = arith.constant 0 : i32
    return %arg0, %c0_i32, %arg1 : i32, i32, i32
  }
  func.func @transform_3(%arg0: i32, %arg1: i32) -> (i32, i32, i32) {
    %c0_i32 = arith.constant 0 : i32
    %c0_i32_0 = arith.constant 0 : i32
    %c0_i32_1 = arith.constant 0 : i32
    return %arg0, %c0_i32, %c0_i32_0 : i32, i32, i32
  }
}

</mosaic_0001>

<llo_original>
// kernel: tpu_custom_call.1
$region0: #{tpu_custom_call.1}
  #allocation0 [shape = 'u32[]', space=smem, size = 0x4, offset = 0x4, fixed_abs, tag = 'smem constant byte address 0x4 - core index']
  #allocation1 [shape = 'u32[144,128]{1,0:T(1,128)}', space=vmem, size = 0x12000, scoped, tag = 'internal scratch']
  #allocation2 [shape = 'f32[1,1,1]{2,1,0:T(1,128)}', space=vmem, size = 0x200, scoped, tag = 'scratch operand']
  #allocation3 [shape = 'f32[1,1,1]{2,1,0:T(1,128)}', space=vmem, size = 0x200, scoped, tag = 'scratch operand']
  #allocation4 [shape = 'f32[1,1,32]{2,1,0:T(1,128)}', space=vmem, size = 0x200, scoped, tag = 'scratch operand']
  %s0 = inlined_call_operand.hbm [shape: f32[2,8,32], index: 0, kind: input, shape index: {}]
  %s1 = inlined_call_operand.vmem [shape: f32[1,1,32], index: 1, kind: input, shape index: {}]
  %s2 = inlined_call_operand.vmem [shape: s32[2,1,8], index: 2, kind: input, shape index: {}]
  %s3 = inlined_call_operand.hbm [shape: f32[2,1,32], index: 3, kind: output, shape index: {}]
  %s4 = sld [smem:[#allocation0]]
  $region57: #{tpu_custom_call.1} parent=0
    _
  %s6 = ssub.s32 1, %s4
  %s7 = scalar_select 0, %s6, %s4
  $region1: #{tpu_custom_call.1} parent=0
    #allocation5 [shape = 'u8[8192]{0}', space=vmem, size = 0x2000, scoped, tag = 'input window, operand 0']
    #allocation6 [shape = 's32[2]{0}', space=sflag, size = 0x8, scoped, tag = 'scoped memory for tpu_custom_call.1']
    #allocation7 [shape = 's32[2]{0}', space=sflag, size = 0x8, scoped, tag = 'scoped memory for tpu_custom_call.1']
    #allocation8 [shape = 'u8[1024]{0}', space=vmem, size = 0x400, scoped, tag = 'output window, operand 0']
    %8 = vsyncpa [#allocation6], 0
    %s9 = scalar_lea.sflag [#allocation6], 1
    %10 = vsyncpa %s9, 0
    %11 = vsyncpa [#allocation7], 0
    %s12 = scalar_lea.sflag [#allocation7], 1
    %13 = vsyncpa %s12, 0
    loop: start=0, step=1, limit=4
    $region2: #{tpu_custom_call.1} parent=1 // loop_pre_header
      _
    $region3: #{tpu_custom_call.1} parent=1 // loop_header
      %s15 = sphi 0, %s19
      %p16 = scmp.ge.s32.totalorder %s15, 4
      %s22 = sphi 0, %s34
      %s23 = sphi 0, %s30
      %s24 = sphi 0, %s22
      %s25 = sphi 0, %s23
      %s26 = sphi 0, %s24
      %s27 = sphi 0, %s25
      %s39 = sphi 0, %s41
      %s42 = sphi 0, %s39
      %s43 = sphi 0, %s42
      %s59 = sphi 0, %s43
      %s63 = sphi 0, %s63
      %s65 = sphi 0, %s63
      %s66 = sphi 0, %s65
      %s80 = sphi 0, %s66
      %s88 = sphi 0, %s90
      %s91 = sphi 0, %s88
      %s92 = sphi 0, %s91
      %s108 = sphi 0, %s92
      %s114 = sphi 0, %s116
      %s117 = sphi 0, %s114
      %s118 = sphi 0, %s117
      %s134 = sphi 0, %s118
    $region4: #{tpu_custom_call.1} parent=1 // loop_header_branch
      %18 = sbr.rel (%p16) target = $region8
    $region5: #{tpu_custom_call.1} parent=1 // loop_body
      %s20 = ssub.s32 %s15, 1
      %s21 = ssub.s32 %s15, 2
      %s28 = sadd.s32 1, %s23
      %p29 = scmp.ge.s32.totalorder %s28, 1
      %s30 = scalar_select %p29, 0, %s28
      %s31 = sadd.s32 1, %s22
      %s32 = scalar_select %p29, %s31, %s22
      %p33 = scmp.ge.s32.totalorder %s32, 2
      %s34 = scalar_select %p33, 0, %s32
      %s35 = ssub.s32 %s22, %s34
      %s36 = ssub.s32 %s23, %s30
      %s37 = sor.u32 %s35, %s36
      %p38 = scmp.eq.s32.totalorder %s37, 0
      %s40 = sadd.s32 %s39, 1
      %s41 = scalar_select %p38, %s39, %s40
      %p44 = pneg %p38
      %p45 = scmp.eq.s32.totalorder %s15, 1
      %p46 = por %p44, %p45
      %p47 = scmp.ne.s32.totalorder %s39, %s42
      %p48 = scmp.eq.s32.totalorder %s15, 0
      %p49 = por %p47, %p48
      %p50 = scmp.ne.s32.totalorder %s39, %s42
      %p51 = scmp.eq.s32.totalorder %s20, 1
      %p52 = por %p50, %p51
      %p53 = scmp.ne.s32.totalorder %s42, %s43
      %p54 = scmp.eq.s32.totalorder %s20, 0
      %p55 = por %p53, %p54
      %p56 = scmp.ne.s32.totalorder %s42, %s43
      %p57 = scmp.eq.s32.totalorder %s21, 1
      %p58 = por %p56, %p57
      %p60 = scmp.ne.s32.totalorder %s43, %s59
      %p61 = scmp.eq.s32.totalorder %s21, 0
      %p62 = por %p60, %p61
      %s64 = sadd.s32 %s63, 1
      %p67 = scmp.eq.s32.totalorder %s15, 1
      %p68 = scmp.ne.s32.totalorder %s63, %s65
      %p69 = scmp.eq.s32.totalorder %s15, 0
      %p70 = por %p68, %p69
      %p71 = scmp.ne.s32.totalorder %s63, %s65
      %p72 = scmp.eq.s32.totalorder %s20, 1
      %p73 = por %p71, %p72
      %p74 = scmp.ne.s32.totalorder %s65, %s66
      %p75 = scmp.eq.s32.totalorder %s20, 0
      %p76 = por %p74, %p75
      %p77 = scmp.ne.s32.totalorder %s65, %s66
      %p78 = scmp.eq.s32.totalorder %s21, 1
      %p79 = por %p77, %p78
      %p81 = scmp.ne.s32.totalorder %s66, %s80
      %p82 = scmp.eq.s32.totalorder %s21, 0
      %p83 = por %p81, %p82
      %s84 = ssub.s32 %s22, %s34
      %s85 = ssub.s32 %s23, %s30
      %s86 = sor.u32 %s84, %s85
      %p87 = scmp.eq.s32.totalorder %s86, 0
      %s89 = sadd.s32 %s88, 1
      %s90 = scalar_select %p87, %s88, %s89
      %p93 = pneg %p87
      %p94 = scmp.eq.s32.totalorder %s15, 1
      %p95 = por %p93, %p94
      %p96 = scmp.ne.s32.totalorder %s88, %s91
      %p97 = scmp.eq.s32.totalorder %s15, 0
      %p98 = por %p96, %p97
      %p99 = scmp.ne.s32.totalorder %s88, %s91
      %p100 = scmp.eq.s32.totalorder %s20, 1
      %p101 = por %p99, %p100
      %p102 = scmp.ne.s32.totalorder %s91, %s92
      %p103 = scmp.eq.s32.totalorder %s20, 0
      %p104 = por %p102, %p103
      %p105 = scmp.ne.s32.totalorder %s91, %s92
      %p106 = scmp.eq.s32.totalorder %s21, 1
      %p107 = por %p105, %p106
      %p109 = scmp.ne.s32.totalorder %s92, %s108
      %p110 = scmp.eq.s32.totalorder %s21, 0
      %p111 = por %p109, %p110
      %s112 = ssub.s32 %s22, %s34
      %p113 = scmp.eq.s32.totalorder %s112, 0
      %s115 = sadd.s32 %s114, 1
      %s116 = scalar_select %p113, %s114, %s115
      %p119 = pneg %p113
      %p120 = scmp.eq.s32.totalorder %s15, 1
      %p121 = por %p119, %p120
      %p122 = scmp.ne.s32.totalorder %s114, %s117
      %p123 = scmp.eq.s32.totalorder %s15, 0
      %p124 = por %p122, %p123
      %p125 = scmp.ne.s32.totalorder %s114, %s117
      %p126 = scmp.eq.s32.totalorder %s20, 1
      %p127 = por %p125, %p126
      %p128 = scmp.ne.s32.totalorder %s117, %s118
      %p129 = scmp.eq.s32.totalorder %s20, 0
      %p130 = por %p128, %p129
      %p131 = scmp.ne.s32.totalorder %s117, %s118
      %p132 = scmp.eq.s32.totalorder %s21, 1
      %p133 = por %p131, %p132
      %p135 = scmp.ne.s32.totalorder %s118, %s134
      %p136 = scmp.eq.s32.totalorder %s21, 0
      %p137 = por %p135, %p136
      %p138 = scmp.le.s32.totalorder 1, %s15
      %p139 = scmp.lt.s32.totalorder %s15, 3
      %p140 = pnand %p138, %p139
      %p141 = pneg %p140
      // Predicated region
      $region9: #{tpu_custom_call.1} parent=5 // pred_check
        _
      $region10: #{tpu_custom_call.1} parent=5 // pred_check_branch
        %143 = sbr.rel (%p140) target = $region12
      $region11: #{tpu_custom_call.1} parent=5 // pred_region
        %s144 = ssub.s32 %s15, 1
        // Predicated region
        $region13: #{tpu_custom_call.1} parent=11 // pred_check
          %p145 = pneg %p76
        $region14: #{tpu_custom_call.1} parent=11 // pred_check_branch
          %147 = sbr.rel (%p145) target = $region16
        $region15: #{tpu_custom_call.1} parent=11 // pred_region
          _
        $region16: #{tpu_custom_call.1} parent=11 // pred_fallthru
          _
      $region12: #{tpu_custom_call.1} parent=5 // pred_fallthru
        _
      %p148 = scmp.lt.s32.totalorder %s15, 2
      // Predicated region
      $region17: #{tpu_custom_call.1} parent=5 // pred_check
        %p149 = pneg %p148
      $region18: #{tpu_custom_call.1} parent=5 // pred_check_branch
        %151 = sbr.rel (%p149) target = $region20
      $region19: #{tpu_custom_call.1} parent=5 // pred_region
        // Predicated region
        $region21: #{tpu_custom_call.1} parent=19 // pred_check
          %p152 = pneg %p49
        $region22: #{tpu_custom_call.1} parent=19 // pred_check_branch
          %154 = sbr.rel (%p152) target = $region24
        $region23: #{tpu_custom_call.1} parent=19 // pred_region
          %s155 = sand.u32 %s39, 1
          %s156 = scalar_lea.sflag [#allocation6], %s155
          %s157 = sand.u32 %s39, 1
          %s158 = smul.addr %s157, 8
          %s159 = scalar_lea.vmem [#allocation5], %s158
          %s161 = ssub.s32 128, 128
          %162 = vsyncadd %s156, %s161
          %s163 = sadd.s32 %s23, %s22
          %s164 = smul.addr %s163, 128
          %s165 = scalar_lea.hbm %s0, %s164
          %s167 = sshll.u32 %s159, 4
          %s168 = int_to_ptr.vmem [resolvable:$true] %s167
          %170 = dma.hbm_to_vmem [thread:$0]  %s165, 128, %s168, %s156
        $region24: #{tpu_custom_call.1} parent=19 // pred_fallthru
          _
        // Predicated region
        $region25: #{tpu_custom_call.1} parent=19 // pred_check
          %p171 = pneg %p98
        $region26: #{tpu_custom_call.1} parent=19 // pred_check_branch
          %173 = sbr.rel (%p171) target = $region28
        $region27: #{tpu_custom_call.1} parent=19 // pred_region
          %p174 = scmp.lt.s32.totalorder %s22, 1
          %s175 = scalar_select %p174, %s22, 1
          %p176 = scmp.lt.s32.totalorder %s23, 0
          %s177 = scalar_select %p176, %s23, 0
          %s178 = sadd.s32 %s177, %s175
          %s179 = scalar_lea.vmem %s2, %s178
        $region28: #{tpu_custom_call.1} parent=19 // pred_fallthru
          _
      $region20: #{tpu_custom_call.1} parent=5 // pred_fallthru
        _
      %p180 = scmp.le.s32.totalorder 1, %s15
      %p181 = scmp.lt.s32.totalorder %s15, 3
      %p182 = pnand %p180, %p181
      %p183 = pneg %p182
      // Predicated region
      $region29: #{tpu_custom_call.1} parent=5 // pred_check
        _
      $region30: #{tpu_custom_call.1} parent=5 // pred_check_branch
        %185 = sbr.rel (%p182) target = $region32
      $region31: #{tpu_custom_call.1} parent=5 // pred_region
        %s186 = ssub.s32 %s15, 1
        %s187 = sand.u32 %s42, 1
        %s188 = scalar_lea.sflag [#allocation6], %s187
        %s189 = sand.u32 %s42, 1
        %s190 = smul.addr %s189, 8
        %s191 = scalar_lea.vmem [#allocation5], %s190
        // Predicated region
        $region33: #{tpu_custom_call.1} parent=31 // pred_check
          %p192 = pneg %p55
        $region34: #{tpu_custom_call.1} parent=31 // pred_check_branch
          %194 = sbr.rel (%p192) target = $region36
        $region35: #{tpu_custom_call.1} parent=31 // pred_region
          %195 = dma.done %s188, 128
        $region36: #{tpu_custom_call.1} parent=31 // pred_fallthru
          _
        %s196 = sand.u32 %s42, 1
        %s197 = scalar_lea.sflag [#allocation6], %s196
        %s198 = sand.u32 %s42, 1
        %s199 = smul.addr %s198, 8
        %s200 = scalar_lea.vmem [#allocation5], %s199
        %p201 = pneg %p55
        %p202 = pneg %p52
        %p203 = pneg %p76
        %p204 = pneg %p73
        %p205 = scmp.lt.s32.totalorder %s24, 1
        %s206 = scalar_select %p205, %s24, 1
        %p207 = scmp.lt.s32.totalorder %s25, 0
        %s208 = scalar_select %p207, %s25, 0
        %s209 = sadd.s32 %s208, %s206
        %s210 = scalar_lea.vmem %s2, %s209
        %p211 = pneg %p104
        %p212 = pneg %p101
        %p213 = pneg %p130
        %p214 = pneg %p127
        %s215 = sand.u32 %s117, 1
        %s216 = scalar_lea.sflag [#allocation7], %s215
        %s217 = sand.u32 %s117, 1
        %s218 = scalar_lea.vmem [#allocation8], %s217
        %p219 = scmp.lt.s32.totalorder %s24, 1
        %s220 = scalar_select %p219, %s24, 1
        %p221 = scmp.lt.s32.totalorder %s25, 0
        %s222 = scalar_select %p221, %s25, 0
        %s223 = sadd.s32 %s222, %s220
        %s224 = scalar_lea.vmem %s2, %s223
        %p225 = scmp.eq.s32.totalorder %s25, 0
        // Predicated region
        $region37: #{tpu_custom_call.1} parent=31 // pred_check
          %p226 = pneg %p225
        $region38: #{tpu_custom_call.1} parent=31 // pred_check_branch
          %228 = sbr.rel (%p226) target = $region40
        $region39: #{tpu_custom_call.1} parent=31 // pred_region
          %vm229 = vcmask 0
          %230 = vst.msk [vmem:[#allocation2] sm:$0x1] %vm229, -3.4028235e+38
          %231 = vst.msk [vmem:[#allocation3] sm:$0x1] %vm229, 0.0
          %vm232 = vcmask 253952
          %233 = vst.msk [vmem:[#allocation4] sm:$0x1] %vm232, 0.0
        $region40: #{tpu_custom_call.1} parent=31 // pred_fallthru
          _
        %v234 = vld [vmem:[%s191] sm:$0xff]
        %v235 = vld [vmem:[%s1] sm:$0x1]
        %vm236 = vcmask 261120
        %v238 = vsel %vm236, %v235, 0
        %v241 = vsel %vm236, %v234, 0
        %243 = vmatprep.subr.mxu0 0.0
        %244 = vmatpush1.xpose.msra.mxu0 0.0
        %245 = vmatprep.subr.mxu0 0.0
        %246 = vmatpush1.xpose.msra.mxu0 0.0
        %247 = vmatprep.subr.mxu0 0.0
        %248 = vmatpush1.xpose.msra.mxu0 0.0
        %249 = vmatprep.subr.mxu0 0.0
        %250 = vmatpush1.xpose.msra.mxu0 0.0
        %251 = vmatprep.subr.mxu0 0.0
        %252 = vmatpush1.xpose.msra.mxu0 0.0
        %253 = vmatprep.subr.mxu0 0.0
        %254 = vmatpush1.xpose.msra.mxu0 0.0
        %255 = vmatprep.subr.mxu0 0.0
        %256 = vmatpush1.xpose.msra.mxu0 0.0
        %257 = vmatprep.subr.mxu0 0.0
        %258 = vmatpush1.xpose.msra.mxu0 0.0
        %259 = vmatprep.subr.mxu0 0.0
        %260 = vmatpush1.xpose.msra.mxu0 0.0
        %261 = vmatprep.subr.mxu0 0.0
        %262 = vmatpush1.xpose.msra.mxu0 0.0
        %263 = vmatprep.subr.mxu0 0.0
        %264 = vmatpush1.xpose.msra.mxu0 0.0
        %265 = vmatprep.subr.mxu0 0.0
        %266 = vmatpush1.xpose.msra.mxu0 0.0
        %267 = vmatprep.subr.mxu0 0.0
        %268 = vmatpush1.xpose.msra.mxu0 0.0
        %269 = vmatprep.subr.mxu0 0.0
        %270 = vmatpush1.xpose.msra.mxu0 0.0
        %271 = vmatprep.subr.mxu0 0.0
        %272 = vmatpush1.xpose.msra.mxu0 0.0
        %273 = vmatprep.subr.mxu0 0.0
        %274 = vmatpush1.xpose.msra.mxu0 %v241
        %275 = vmatprep.subr.mxu0 0.0
        %276 = vmatpush2.xpose.msra.mxu0 0.0
        %277 = vmatprep.subr.mxu0 0.0
        %278 = vmatpush2.xpose.msra.mxu0 0.0
        %279 = vmatprep.subr.mxu0 0.0
        %280 = vmatpush2.xpose.msra.mxu0 0.0
        %281 = vmatprep.subr.mxu0 0.0
        %282 = vmatpush2.xpose.msra.mxu0 0.0
        %283 = vmatprep.subr.mxu0 0.0
        %284 = vmatpush2.xpose.msra.mxu0 0.0
        %285 = vmatprep.subr.mxu0 0.0
        %286 = vmatpush2.xpose.msra.mxu0 0.0
        %287 = vmatprep.subr.mxu0 0.0
        %288 = vmatpush2.xpose.msra.mxu0 0.0
        %289 = vmatprep.subr.mxu0 0.0
        %290 = vmatpush2.xpose.msra.mxu0 0.0
        %291 = vmatprep.subr.mxu0 0.0
        %292 = vmatpush2.xpose.msra.mxu0 0.0
        %293 = vmatprep.subr.mxu0 0.0
        %294 = vmatpush2.xpose.msra.mxu0 0.0
        %295 = vmatprep.subr.mxu0 0.0
        %296 = vmatpush2.xpose.msra.mxu0 0.0
        %297 = vmatprep.subr.mxu0 0.0
        %298 = vmatpush2.xpose.msra.mxu0 0.0
        %299 = vmatprep.subr.mxu0 0.0
        %300 = vmatpush2.xpose.msra.mxu0 0.0
        %301 = vmatprep.subr.mxu0 0.0
        %302 = vmatpush2.xpose.msra.mxu0 0.0
        %303 = vmatprep.subr.mxu0 0.0
        %304 = vmatpush2.xpose.msra.mxu0 0.0
        %305 = vmatprep.subr.mxu0 0.0
        %306 = vmatpush2.xpose.msra.mxu0 0.0
        %307 = vmatprep.mubr.f32.mxu0 0.0
        %308 = vmatmul.mubr.f32.gmra.mxu0 %v238
        %v309 = vpop.f32.mrf.mxu0
        %v310 = vadd.f32 0.0, %v309
        %v311 = vpop.f32.mrf.mxu0
        %312 = vdwg.mxu0
        %v313 = vld [vmem:[%s224] sm:$0x1]
        %vm314 = vcmp.ne.s32.totalorder %v313, 0
        %v315 = vsel %vm314, %v310, -3.4028235e+38
        %v316 = vld [vmem:[#allocation2] sm:$0x1]
        %vm317 = vcmask 57344
        %v318 = vsel %vm317, %v315, -inf
        %319 = vmax.xlane.f32.xlu0 %v318
        %v320 = vpop.xlane.xlu0 %319
        %v321 = vmax.f32 %v316, %v320
        %v322 = vsub.f32 %v316, %v321
        %v323 = vmul.f32 %v322, 1.442695
        %v324 = vpow.pop %v323
        %326 = vset.pattern.permute.xlu0 0
        %327 = vperm.xlu0 %326, %v321
        %v328 = vpop.permute.xlu0 %327
        %v330 = vlaneseq
        %v331 = vshrl.u32 %v330, 7
        %v332 = vsub.s32 0, %v331
        %v333 = vrot.slane %v328, %v332
        %v334 = vsub.f32 %v315, %v333
        %v335 = vmul.f32 %v334, 1.442695
        %v336 = vpow.pop %v335
        %v337 = vld [vmem:[#allocation3] sm:$0x1]
        %v338 = vmul.f32 %v324, %v337
        %v339 = vsel %vm317, %v336, 0.0
        %340 = vadd.xlane.f32.xlu0 %v339
        %v341 = vpop.xlane.xlu0 %340
        %v342 = vadd.f32 %v338, %v341
        %vm343 = vcmask 0
        %344 = vst.msk [vmem:[#allocation3] sm:$0x1] %vm343, %v342
        %v345 = vld [vmem:[#allocation4] sm:$0x1]
        %347 = vset.pattern.permute.xlu0 0
        %348 = vperm.xlu0 %347, %v324
        %v349 = vpop.permute.xlu0 %348
        %v351 = vlaneseq
        %v352 = vshrl.u32 %v351, 7
        %v353 = vsub.s32 0, %v352
        %v354 = vrot.slane %v349, %v353
        %v355 = vmul.f32 %v354, %v345
        %vm356 = vcmask 64512
        %v358 = vsel %vm356, %v336, 0
        %360 = vmatprep.subr.mxu0 0.0
        %361 = vmatpush1.msra.mxu0 0.0
        %362 = vmatprep.subr.mxu0 0.0
        %363 = vmatpush1.msra.mxu0 0.0
        %364 = vmatprep.subr.mxu0 0.0
        %365 = vmatpush1.msra.mxu0 0.0
        %366 = vmatprep.subr.mxu0 0.0
        %367 = vmatpush1.msra.mxu0 0.0
        %368 = vmatprep.subr.mxu0 0.0
        %369 = vmatpush1.msra.mxu0 0.0
        %370 = vmatprep.subr.mxu0 0.0
        %371 = vmatpush1.msra.mxu0 0.0
        %372 = vmatprep.subr.mxu0 0.0
        %373 = vmatpush1.msra.mxu0 0.0
        %374 = vmatprep.subr.mxu0 0.0
        %375 = vmatpush1.msra.mxu0 0.0
        %376 = vmatprep.subr.mxu0 0.0
        %377 = vmatpush1.msra.mxu0 0.0
        %378 = vmatprep.subr.mxu0 0.0
        %379 = vmatpush1.msra.mxu0 0.0
        %380 = vmatprep.subr.mxu0 0.0
        %381 = vmatpush1.msra.mxu0 0.0
        %382 = vmatprep.subr.mxu0 0.0
        %383 = vmatpush1.msra.mxu0 0.0
        %384 = vmatprep.subr.mxu0 0.0
        %385 = vmatpush1.msra.mxu0 0.0
        %386 = vmatprep.subr.mxu0 0.0
        %387 = vmatpush1.msra.mxu0 0.0
        %388 = vmatprep.subr.mxu0 0.0
        %389 = vmatpush1.msra.mxu0 0.0
        %390 = vmatprep.subr.mxu0 0.0
        %391 = vmatpush1.msra.mxu0 %v234
        %392 = vmatprep.subr.mxu0 0.0
        %393 = vmatpush2.msra.mxu0 0.0
        %394 = vmatprep.subr.mxu0 0.0
        %395 = vmatpush2.msra.mxu0 0.0
        %396 = vmatprep.subr.mxu0 0.0
        %397 = vmatpush2.msra.mxu0 0.0
        %398 = vmatprep.subr.mxu0 0.0
        %399 = vmatpush2.msra.mxu0 0.0
        %400 = vmatprep.subr.mxu0 0.0
        %401 = vmatpush2.msra.mxu0 0.0
        %402 = vmatprep.subr.mxu0 0.0
        %403 = vmatpush2.msra.mxu0 0.0
        %404 = vmatprep.subr.mxu0 0.0
        %405 = vmatpush2.msra.mxu0 0.0
        %406 = vmatprep.subr.mxu0 0.0
        %407 = vmatpush2.msra.mxu0 0.0
        %408 = vmatprep.subr.mxu0 0.0
        %409 = vmatpush2.msra.mxu0 0.0
        %410 = vmatprep.subr.mxu0 0.0
        %411 = vmatpush2.msra.mxu0 0.0
        %412 = vmatprep.subr.mxu0 0.0
        %413 = vmatpush2.msra.mxu0 0.0
        %414 = vmatprep.subr.mxu0 0.0
        %415 = vmatpush2.msra.mxu0 0.0
        %416 = vmatprep.subr.mxu0 0.0
        %417 = vmatpush2.msra.mxu0 0.0
        %418 = vmatprep.subr.mxu0 0.0
        %419 = vmatpush2.msra.mxu0 0.0
        %420 = vmatprep.subr.mxu0 0.0
        %421 = vmatpush2.msra.mxu0 0.0
        %422 = vmatprep.subr.mxu0 0.0
        %423 = vmatpush2.msra.mxu0 0.0
        %424 = vmatprep.mubr.f32.mxu0 0.0
        %425 = vmatmul.mubr.f32.gmra.mxu0 %v358
        %v426 = vpop.f32.mrf.mxu0
        %v427 = vadd.f32 0.0, %v426
        %v428 = vpop.f32.mrf.mxu0
        %429 = vdwg.mxu0
        %v430 = vadd.f32 %v355, %v427
        %vm431 = vcmask 253952
        %432 = vst.msk [vmem:[#allocation4] sm:$0x1] %vm431, %v430
        %433 = vst.msk [vmem:[#allocation2] sm:$0x1] %vm343, %v321
        // Predicated region
        $region41: #{tpu_custom_call.1} parent=31 // pred_check
          %p434 = pneg %p225
        $region42: #{tpu_custom_call.1} parent=31 // pred_check_branch
          %436 = sbr.rel (%p434) target = $region44
        $region43: #{tpu_custom_call.1} parent=31 // pred_region
          %v437 = vld [vmem:[#allocation3] sm:$0x1]
          %v438 = vrcp.pop %v437
          %v439 = vld [vmem:[#allocation4] sm:$0x1]
          %441 = vset.pattern.permute.xlu0 0
          %442 = vperm.xlu0 %441, %v438
          %v443 = vpop.permute.xlu0 %442
          %v445 = vlaneseq
          %v446 = vshrl.u32 %v445, 7
          %v447 = vsub.s32 0, %v446
          %v448 = vrot.slane %v443, %v447
          %v449 = vmul.f32 %v439, %v448
          %450 = vst.msk [vmem:[%s218] sm:$0x1] %vm431, %v449
        $region44: #{tpu_custom_call.1} parent=31 // pred_fallthru
          _
        %s451 = sand.u32 %s117, 1
        %s452 = scalar_lea.sflag [#allocation7], %s451
        %s453 = sand.u32 %s117, 1
        %s454 = scalar_lea.vmem [#allocation8], %s453
        // Predicated region
        $region45: #{tpu_custom_call.1} parent=31 // pred_check
          %p455 = pneg %p127
        $region46: #{tpu_custom_call.1} parent=31 // pred_check_branch
          %457 = sbr.rel (%p455) target = $region48
        $region47: #{tpu_custom_call.1} parent=31 // pred_region
          %s459 = ssub.s32 16, 16
          %460 = vsyncadd %s452, %s459
          %s461 = smul.addr %s24, 16
          %s462 = scalar_lea.hbm %s3, %s461
          %s464 = sshll.u32 %s454, 4
          %s465 = int_to_ptr.vmem [resolvable:$true] %s464
          %467 = dma.vmem_to_hbm [thread:$0]  %s465, 16, %s462, %s452
        $region48: #{tpu_custom_call.1} parent=31 // pred_fallthru
          _
      $region32: #{tpu_custom_call.1} parent=5 // pred_fallthru
        _
      %p468 = scmp.le.s32.totalorder 2, %s15
      // Predicated region
      $region49: #{tpu_custom_call.1} parent=5 // pred_check
        %p469 = pneg %p468
      $region50: #{tpu_custom_call.1} parent=5 // pred_check_branch
        %471 = sbr.rel (%p469) target = $region52
      $region51: #{tpu_custom_call.1} parent=5 // pred_region
        %s472 = ssub.s32 %s15, 2
        // Predicated region
        $region53: #{tpu_custom_call.1} parent=51 // pred_check
          %p473 = pneg %p133
        $region54: #{tpu_custom_call.1} parent=51 // pred_check_branch
          %475 = sbr.rel (%p473) target = $region56
        $region55: #{tpu_custom_call.1} parent=51 // pred_region
          %s476 = sand.u32 %s118, 1
          %s477 = scalar_lea.sflag [#allocation7], %s476
          %s478 = sand.u32 %s118, 1
          %s479 = scalar_lea.vmem [#allocation8], %s478
          %480 = dma.done %s477, 16
        $region56: #{tpu_custom_call.1} parent=51 // pred_fallthru
          _
      $region52: #{tpu_custom_call.1} parent=5 // pred_fallthru
        _
    $region6: #{tpu_custom_call.1} parent=1 // loop_footer
      %s19 = sadd.s32 1, %s15
    $region7: #{tpu_custom_call.1} parent=1 // loop_footer_branch
      %14 = sbr.rel target = $region3
    $region8: #{tpu_custom_call.1} parent=1 // loop_exit
      _
    %481 = vsyncpa [#allocation6], 1
    %s482 = scalar_lea.sflag [#allocation6], 1
    %483 = vsyncpa %s482, 1
    %484 = vsyncpa [#allocation7], 1
    %s485 = scalar_lea.sflag [#allocation7], 1
    %486 = vsyncpa %s485, 1

</llo_original>
